<compile_context>
chip_gen: v7x
topology: tpu7x:2x2x1
jax: 0.10.0
libtpu: 0.0.40
codegen_flags: <defaults>
</compile_context>

<pallas_src>
import functools

import jax
import jax.numpy as jnp
from jax.experimental import pallas as pl
from jax.experimental.pallas import tpu as pltpu


# ----------------------------- Pallas kernel -----------------------------

def _ln_mod_linear_kernel(x_ref, sc_ref, sh_ref, w_ref, b_ref, o_ref, *,
                          mxu_dtype, eps):
    # x_ref : (1, tm, Hin)   activations tile
    # sc_ref: (1, 1,  Hin)   modulation scale (per batch)
    # sh_ref: (1, 1,  Hin)   modulation shift (per batch)
    # w_ref : (Hin, tn)      weight panel (already in mxu_dtype, lane-padded)
    # b_ref : (1,  tn)       bias panel (f32, lane-padded)
    # o_ref : (1, tm, tn)
    x = x_ref[0].astype(jnp.float32)                      # (tm, Hin)

    # LayerNorm(eps, no affine) -- single-pass stats (one reduction pass saved).
    # var = E[x^2] - mu^2 is clamped at 0 to guard against cancellation.
    mu = jnp.mean(x, axis=-1, keepdims=True)
    ms = jnp.mean(x * x, axis=-1, keepdims=True)
    var = jnp.maximum(ms - mu * mu, 0.0)
    xn = (x - mu) * jax.lax.rsqrt(var + eps)

    # modulation: (1 + scale) * x_n + shift    (f32 VPU math)
    xm = (1.0 + sc_ref[0].astype(jnp.float32)) * xn + sh_ref[0].astype(jnp.float32)

    # projection on the MXU: bf16 feed by default, f32 accumulate.
    y = jnp.dot(xm.astype(mxu_dtype), w_ref[...],
                preferred_element_type=jnp.float32)
    y = y + b_ref[...].astype(jnp.float32)

    o_ref[0] = y.astype(o_ref.dtype)


# ----------------------------- helpers -----------------------------

def _round_up(v, m):
    return ((v + m - 1) // m) * m


def _pick_tm(L, target):
    """Largest multiple-of-8 divisor of L that is <= target; otherwise pad L."""
    best = None
    d = 8
    while d <= min(L, target):
        if L % d == 0:
            best = d
        d += 8
    if best is not None:
        return best, L
    tm = min(target, _round_up(L, 8))
    return tm, _round_up(L, tm)


# ----------------------------- wrapper -----------------------------

def last_layer_forward(x, distill_vec, w, b, *,
                       tm=None, tn=None, mxu_dtype=jnp.bfloat16,
                       interpret=False):
    """Pallas implementation of LastLayer.forward.

    x:           (B, L, Hin)   float32 or bfloat16
    distill_vec: (shift, scale), each (B, Hin) or (B, 1, Hin)
    w:           (Hin, Hout)
    b:           (Hout,) or (1, Hout)
    """
    shift, scale = distill_vec[0], distill_vec[1]
    # mirror the PyTorch squeeze/unsqueeze logic -> normalize to (B, 1, Hin)
    if shift.ndim == 3 and shift.shape[1] == 1:
        shift = shift[:, 0]
    if scale.ndim == 3 and scale.shape[1] == 1:
        scale = scale[:, 0]
    shift = shift[:, None, :].astype(jnp.float32)
    scale = scale[:, None, :].astype(jnp.float32)

    B, L, Hin = x.shape
    Hout = w.shape[-1]
    out_dtype = x.dtype

    # ---- lane-dense output: pad Hout up to a multiple of 128 lanes ----
    Hout_pad = max(128, _round_up(Hout, 128))
    if Hout_pad != Hout:
        w = jnp.pad(w, ((0, 0), (0, Hout_pad - Hout)))
        b = jnp.pad(jnp.reshape(b, (-1,)), (0, Hout_pad - Hout))
    b = jnp.reshape(b, (1, Hout_pad)).astype(jnp.float32)
    w_cast = w.astype(mxu_dtype)                 # cast once, host-side (halves W DMA)

    # ---- VMEM-aware tile sizing ----
    try:
        vmem_cap = int(pltpu.get_tpu_info().vmem_capacity_bytes)
    except Exception:
        vmem_cap = 64 * 1024 * 1024              # conservative (v7x per-TC)
    if tm is None:
        tm_target = 1024 if vmem_cap >= 100 * 1024 * 1024 else 512
    else:
        tm_target = max(8, (tm // 8) * 8)
    tm_, L_pad = _pick_tm(L, tm_target)
    if L_pad != L:
        # padded rows produce finite garbage (LN of zeros is zero); sliced off below
        x = jnp.pad(x, ((0, 0), (0, L_pad - L), (0, 0)))

    if tn is None:
        tn = Hout_pad if Hout_pad <= 512 else (512 if Hout_pad % 512 == 0 else 128)
    if Hout_pad % tn != 0 or tn % 128 != 0:
        tn = 128                                  # always divides Hout_pad

    nt_l = L_pad // tm_
    nt_n = Hout_pad // tn

    # ---- grid axis order: keep the array that would be re-streamed most resident ----
    x_itemsize = jnp.dtype(x.dtype).itemsize
    w_itemsize = jnp.dtype(mxu_dtype).itemsize
    w_restream = nt_l * (Hin * Hout_pad * w_itemsize)   # bytes if N is innermost
    x_restream = nt_n * (L_pad * Hin * x_itemsize)      # bytes if L is innermost
    n_inner = w_restream <= x_restream

    if n_inner:
        grid = (B, nt_l, nt_n)
        x_map = lambda bb, i, j: (bb, i, 0)
        sv_map = lambda bb, i, j: (bb, 0, 0)
        w_map = lambda bb, i, j: (0, j)
        bias_map = lambda bb, i, j: (0, j)
        o_map = lambda bb, i, j: (bb, i, j)
    else:
        grid = (B, nt_n, nt_l)
        x_map = lambda bb, j, i: (bb, i, 0)
        sv_map = lambda bb, j, i: (bb, 0, 0)
        w_map = lambda bb, j, i: (0, j)
        bias_map = lambda bb, j, i: (0, j)
        o_map = lambda bb, j, i: (bb, i, j)

    # ---- VMEM limit from actual tile footprints (double-buffered) + f32 scratch ----
    x_tile = tm_ * Hin * x_itemsize
    w_tile = Hin * tn * w_itemsize
    o_tile = tm_ * tn * jnp.dtype(out_dtype).itemsize
    small = 2 * Hin * 4 + tn * 4
    scratch = tm_ * Hin * 4 * 3 + tm_ * tn * 4          # in-kernel f32 intermediates
    need = 2 * (x_tile + w_tile + o_tile + small) + scratch + (4 << 20)
    vmem_limit = int(max(32 << 20, min(need, vmem_cap - (8 << 20))))

    kernel = functools.partial(_ln_mod_linear_kernel, mxu_dtype=mxu_dtype, eps=1e-6)

    out = pl.pallas_call(
        kernel,
        out_shape=jax.ShapeDtypeStruct((B, L_pad, Hout_pad), out_dtype),
        grid=grid,
        in_specs=[
            pl.BlockSpec((1, tm_, Hin), x_map),     # x tile
            pl.BlockSpec((1, 1, Hin), sv_map),      # scale
            pl.BlockSpec((1, 1, Hin), sv_map),      # shift
            pl.BlockSpec((Hin, tn), w_map),         # W panel
            pl.BlockSpec((1, tn), bias_map),        # bias panel
        ],
        out_specs=pl.BlockSpec((1, tm_, tn), o_map),
        compiler_params=pltpu.CompilerParams(
            dimension_semantics=("parallel", "parallel", "parallel"),
            vmem_limit_bytes=vmem_limit,
        ),
        interpret=interpret,
    )(x, scale, shift, w_cast, b)

    return out[:, :L, :Hout]


# ------------------------- pure-JAX reference -------------------------

def reference_forward(x, distill_vec, w, b):
    shift, scale = distill_vec[0], distill_vec[1]
    if shift.ndim == 3 and shift.shape[1] == 1:
        shift = shift[:, 0]
    if scale.ndim == 3 and scale.shape[1] == 1:
        scale = scale[:, 0]
    shift = shift[:, None, :]
    scale = scale[:, None, :]

    x = x.astype(jnp.float32)
    mu = jnp.mean(x, axis=-1, keepdims=True)
    var = jnp.mean((x - mu) ** 2, axis=-1, keepdims=True)
    xn = (x - mu) / jnp.sqrt(var + 1e-6)
    xm = (1.0 + scale) * xn + shift
    return xm @ w + jnp.reshape(b, (1, 1, -1))


# ------------------------------------ main ------------------------------------

if __name__ == "__main__":
    B = 2
    hidden = 32
    patch_size = 2
    out_channels = 4
    out_features = patch_size * patch_size * out_channels   # 16
    L = 64

    key = jax.random.PRNGKey(0)
    k_x, k_sh, k_sc, k_w, k_b = jax.random.split(key, 5)

    x = jax.random.normal(k_x, (B, L, hidden), dtype=jnp.float32)
    shift = (0.1 * jax.random.normal(k_sh, (B, 1, hidden))).astype(jnp.float32)
    scale = (0.1 * jax.random.normal(k_sc, (B, 1, hidden))).astype(jnp.float32)
    w = (0.02 * jax.random.normal(k_w, (hidden, out_features))).astype(jnp.float32)
    b = (0.02 * jax.random.normal(k_b, (out_features,))).astype(jnp.float32)

    distill_vec = (shift, scale)
    ref = reference_forward(x, distill_vec, w, b)

    # f32 MXU feed: tight tolerance.
    out_f32 = last_layer_forward(x, distill_vec, w, b, mxu_dtype=jnp.float32)
    jax.block_until_ready(out_f32)
    assert out_f32.shape == (B, L, out_features)
    assert jnp.allclose(out_f32, ref, atol=1e-3, rtol=1e-3), \
        float(jnp.max(jnp.abs(out_f32 - ref)))

    # default path: bf16 MXU feed, f32 accumulate / LN math -> looser tolerance.
    out_bf = last_layer_forward(x, distill_vec, w, b)
    jax.block_until_ready(out_bf)
    assert jnp.allclose(out_bf, ref, atol=3e-2, rtol=3e-2), \
        float(jnp.max(jnp.abs(out_bf - ref)))

    # ragged sequence length (exercises the L-padding path; 50 has no /8 divisor).
    L2 = 50
    x2 = jax.random.normal(jax.random.PRNGKey(1), (B, L2, hidden), dtype=jnp.float32)
    ref2 = reference_forward(x2, distill_vec, w, b)
    out2 = last_layer_forward(x2, distill_vec, w, b)
    jax.block_until_ready(out2)
    assert out2.shape == (B, L2, out_features)
    assert jnp.allclose(out2, ref2, atol=3e-2, rtol=3e-2), \
        float(jnp.max(jnp.abs(out2 - ref2)))

    print("KERNEL_OK")
</pallas_src>

<mosaic_0001>
module attributes {stable_mosaic.version = 11 : i64} {
  func.func @_ln_mod_linear_kernel(%arg0: i32, %arg1: i32, %arg2: i32, %arg3: memref<1x64x32xf32, #tpu.memory_space<vmem>>, %arg4: memref<1x1x32xf32, #tpu.memory_space<vmem>>, %arg5: memref<1x1x32xf32, #tpu.memory_space<vmem>>, %arg6: memref<32x128xf32, #tpu.memory_space<vmem>>, %arg7: memref<1x128xf32, #tpu.memory_space<vmem>>, %arg8: memref<1x64x128xf32, #tpu.memory_space<vmem>>) attributes {dimension_semantics = [#tpu.dimension_semantics<parallel>, #tpu.dimension_semantics<parallel>, #tpu.dimension_semantics<parallel>], iteration_bounds = array<i64: 2, 1, 1>, scalar_prefetch = 0 : i64, scratch_operands = 0 : i64, tpu.core_type = #tpu.core_type<tc>, window_params = [{transform_indices = @transform_0, window_bounds = array<i64: 1, 64, 32>}, {transform_indices = @transform_1, window_bounds = array<i64: 1, 1, 32>}, {transform_indices = @transform_2, window_bounds = array<i64: 1, 1, 32>}, {transform_indices = @transform_3, window_bounds = array<i64: 32, 128>}, {transform_indices = @transform_4, window_bounds = array<i64: 1, 128>}, {transform_indices = @transform_5, window_bounds = array<i64: 1, 64, 128>}]} {
    %c0 = arith.constant 0 : index
    %c0_0 = arith.constant 0 : index
    %c0_1 = arith.constant 0 : index
    %0 = vector.load %arg3[%c0, %c0_0, %c0_1] : memref<1x64x32xf32, #tpu.memory_space<vmem>>, vector<1x64x32xf32>
    %1 = vector.shape_cast %0 : vector<1x64x32xf32> to vector<64x32xf32>
    %cst = arith.constant dense<0.000000e+00> : vector<64xf32>
    %2 = vector.multi_reduction <add>, %1, %cst [1] : vector<64x32xf32> to vector<64xf32>
    %3 = vector.shape_cast %2 : vector<64xf32> to vector<64x1xf32>
    %cst_2 = arith.constant 3.200000e+01 : f32
    %4 = vector.broadcast %cst_2 : f32 to vector<64x1xf32>
    %5 = arith.divf %3, %4 : vector<64x1xf32>
    %6 = arith.mulf %1, %1 : vector<64x32xf32>
    %cst_3 = arith.constant dense<0.000000e+00> : vector<64xf32>
    %7 = vector.multi_reduction <add>, %6, %cst_3 [1] : vector<64x32xf32> to vector<64xf32>
    %8 = vector.shape_cast %7 : vector<64xf32> to vector<64x1xf32>
    %cst_4 = arith.constant 3.200000e+01 : f32
    %9 = vector.broadcast %cst_4 : f32 to vector<64x1xf32>
    %10 = arith.divf %8, %9 : vector<64x1xf32>
    %11 = arith.mulf %5, %5 : vector<64x1xf32>
    %12 = arith.subf %10, %11 : vector<64x1xf32>
    %cst_5 = arith.constant 0.000000e+00 : f32
    %13 = vector.broadcast %cst_5 : f32 to vector<64x1xf32>
    %14 = arith.maximumf %12, %13 : vector<64x1xf32>
    %15 = vector.broadcast %5 : vector<64x1xf32> to vector<64x32xf32>
    %16 = arith.subf %1, %15 : vector<64x32xf32>
    %cst_6 = arith.constant 9.99999997E-7 : f32
    %17 = vector.broadcast %cst_6 : f32 to vector<64x1xf32>
    %18 = arith.addf %14, %17 : vector<64x1xf32>
    %19 = math.rsqrt %18 : vector<64x1xf32>
    %20 = vector.broadcast %19 : vector<64x1xf32> to vector<64x32xf32>
    %21 = arith.mulf %16, %20 : vector<64x32xf32>
    %c0_7 = arith.constant 0 : index
    %c0_8 = arith.constant 0 : index
    %c0_9 = arith.constant 0 : index
    %22 = vector.load %arg4[%c0_7, %c0_8, %c0_9] : memref<1x1x32xf32, #tpu.memory_space<vmem>>, vector<1x1x32xf32>
    %23 = vector.shape_cast %22 : vector<1x1x32xf32> to vector<1x32xf32>
    %cst_10 = arith.constant 1.000000e+00 : f32
    %24 = vector.broadcast %cst_10 : f32 to vector<1x32xf32>
    %25 = arith.addf %24, %23 : vector<1x32xf32>
    %26 = vector.broadcast %25 : vector<1x32xf32> to vector<64x32xf32>
    %27 = arith.mulf %26, %21 : vector<64x32xf32>
    %c0_11 = arith.constant 0 : index
    %c0_12 = arith.constant 0 : index
    %c0_13 = arith.constant 0 : index
    %28 = vector.load %arg5[%c0_11, %c0_12, %c0_13] : memref<1x1x32xf32, #tpu.memory_space<vmem>>, vector<1x1x32xf32>
    %29 = vector.shape_cast %28 : vector<1x1x32xf32> to vector<1x32xf32>
    %30 = vector.broadcast %29 : vector<1x32xf32> to vector<64x32xf32>
    %31 = arith.addf %27, %30 : vector<64x32xf32>
    %c0_14 = arith.constant 0 : index
    %c0_15 = arith.constant 0 : index
    %32 = vector.load %arg6[%c0_14, %c0_15] : memref<32x128xf32, #tpu.memory_space<vmem>>, vector<32x128xf32>
    %cst_16 = arith.constant dense<0.000000e+00> : vector<64x128xf32>
    %33 = tpu.matmul %31, %32, %cst_16 {dimension_numbers = #tpu.dot_dimension_numbers<[1], [0], [0], [1], [0, 0, 1, 1], [], []>} : vector<64x32xf32>, vector<32x128xf32>, vector<64x128xf32> -> vector<64x128xf32>
    %c0_17 = arith.constant 0 : index
    %c0_18 = arith.constant 0 : index
    %34 = vector.load %arg7[%c0_17, %c0_18] : memref<1x128xf32, #tpu.memory_space<vmem>>, vector<1x128xf32>
    %35 = vector.broadcast %34 : vector<1x128xf32> to vector<64x128xf32>
    %36 = arith.addf %33, %35 : vector<64x128xf32>
    %c0_19 = arith.constant 0 : index
    %c0_20 = arith.constant 0 : index
    %c0_21 = arith.constant 0 : index
    %37 = vector.load %arg8[%c0_19, %c0_20, %c0_21] : memref<1x64x128xf32, #tpu.memory_space<vmem>>, vector<1x64x128xf32>
    %38 = vector.shape_cast %37 : vector<1x64x128xf32> to vector<64x128xf32>
    %39 = vector.shape_cast %36 : vector<64x128xf32> to vector<1x64x128xf32>
    tpu.vector_store %arg8[%c0_19, %c0_20, %c0_21], %39 {strides = array<i32>} : memref<1x64x128xf32, #tpu.memory_space<vmem>>, vector<1x64x128xf32>,
    return
  }
  func.func @transform_0(%arg0: i32, %arg1: i32, %arg2: i32) -> (i32, i32, i32) {
    %c0_i32 = arith.constant 0 : i32
    %c0_i32_0 = arith.constant 0 : i32
    return %arg0, %arg2, %c0_i32 : i32, i32, i32
  }
  func.func @transform_1(%arg0: i32, %arg1: i32, %arg2: i32) -> (i32, i32, i32) {
    %c0_i32 = arith.constant 0 : i32
    %c0_i32_0 = arith.constant 0 : i32
    %c0_i32_1 = arith.constant 0 : i32
    return %arg0, %c0_i32, %c0_i32_0 : i32, i32, i32
  }
  func.func @transform_2(%arg0: i32, %arg1: i32, %arg2: i32) -> (i32, i32, i32) {
    %c0_i32 = arith.constant 0 : i32
    %c0_i32_0 = arith.constant 0 : i32
    %c0_i32_1 = arith.constant 0 : i32
    return %arg0, %c0_i32, %c0_i32_0 : i32, i32, i32
  }
  func.func @transform_3(%arg0: i32, %arg1: i32, %arg2: i32) -> (i32, i32) {
    %c0_i32 = arith.constant 0 : i32
    %c0_i32_0 = arith.constant 0 : i32
    return %c0_i32, %arg1 : i32, i32
  }
  func.func @transform_4(%arg0: i32, %arg1: i32, %arg2: i32) -> (i32, i32) {
    %c0_i32 = arith.constant 0 : i32
    %c0_i32_0 = arith.constant 0 : i32
    return %c0_i32, %arg1 : i32, i32
  }
  func.func @transform_5(%arg0: i32, %arg1: i32, %arg2: i32) -> (i32, i32, i32) {
    %c0_i32 = arith.constant 0 : i32
    return %arg0, %arg2, %arg1 : i32, i32, i32
  }
}

</mosaic_0001>

<llo_original>
// kernel: tpu_custom_call.1
$region0: #{tpu_custom_call.1}
  #allocation0 [shape = 'u32[]', space=smem, size = 0x4, offset = 0x4, fixed_abs, tag = 'smem constant byte address 0x4 - core index']
  #allocation1 [shape = 'u32[144,128]{1,0:T(1,128)}', space=vmem, size = 0x12000, scoped, tag = 'internal scratch']
  %s0 = inlined_call_operand.vmem [shape: f32[2,64,32], index: 0, kind: input, shape index: {}]
  %s1 = inlined_call_operand.vmem [shape: f32[2,1,32], index: 1, kind: input, shape index: {}]
  %s2 = inlined_call_operand.vmem [shape: f32[2,1,32], index: 2, kind: input, shape index: {}]
  %s3 = inlined_call_operand.vmem [shape: f32[32,128], index: 3, kind: input, shape index: {}]
  %s4 = inlined_call_operand.vmem [shape: f32[1,128], index: 4, kind: input, shape index: {}]
  %s5 = inlined_call_operand.hbm [shape: f32[2,64,128], index: 5, kind: output, shape index: {}]
  %s6 = sld [smem:[#allocation0]]
  $region53: #{tpu_custom_call.1} parent=0
    _
  %s8 = ssub.s32 1, %s6
  %s9 = scalar_select 0, %s8, %s6
  $region1: #{tpu_custom_call.1} parent=0
    #allocation2 [shape = 'u8[65536]{0}', space=vmem, size = 0x10000, scoped, tag = 'output window, operand 0']
    #allocation3 [shape = 's32[2]{0}', space=sflag, size = 0x8, scoped, tag = 'scoped memory for tpu_custom_call.1']
    %10 = vsyncpa [#allocation3], 0
    %s11 = scalar_lea.sflag [#allocation3], 1
    %12 = vsyncpa %s11, 0
    loop: start=0, step=1, limit=4
    $region2: #{tpu_custom_call.1} parent=1 // loop_pre_header
      _
    $region3: #{tpu_custom_call.1} parent=1 // loop_header
      %s14 = sphi 0, %s18
      %p15 = scmp.ge.s32.totalorder %s14, 4
      %s21 = sphi 0, %s40
      %s22 = sphi 0, %s36
      %s23 = sphi 0, %s32
      %s24 = sphi 0, %s21
      %s25 = sphi 0, %s22
      %s26 = sphi 0, %s23
      %s27 = sphi 0, %s24
      %s28 = sphi 0, %s25
      %s29 = sphi 0, %s26
      %s45 = sphi 0, %s47
      %s48 = sphi 0, %s45
      %s49 = sphi 0, %s48
      %s65 = sphi 0, %s49
      %s71 = sphi 0, %s73
      %s74 = sphi 0, %s71
      %s75 = sphi 0, %s74
      %s91 = sphi 0, %s75
      %s97 = sphi 0, %s99
      %s100 = sphi 0, %s97
      %s101 = sphi 0, %s100
      %s117 = sphi 0, %s101
      %s123 = sphi 0, %s125
      %s126 = sphi 0, %s123
      %s127 = sphi 0, %s126
      %s143 = sphi 0, %s127
      %s149 = sphi 0, %s151
      %s152 = sphi 0, %s149
      %s153 = sphi 0, %s152
      %s169 = sphi 0, %s153
      %s179 = sphi 0, %s181
      %s182 = sphi 0, %s179
      %s183 = sphi 0, %s182
      %s199 = sphi 0, %s183
    $region4: #{tpu_custom_call.1} parent=1 // loop_header_branch
      %17 = sbr.rel (%p15) target = $region8
    $region5: #{tpu_custom_call.1} parent=1 // loop_body
      %s19 = ssub.s32 %s14, 1
      %s20 = ssub.s32 %s14, 2
      %s30 = sadd.s32 1, %s23
      %p31 = scmp.ge.s32.totalorder %s30, 1
      %s32 = scalar_select %p31, 0, %s30
      %s33 = sadd.s32 1, %s22
      %s34 = scalar_select %p31, %s33, %s22
      %p35 = scmp.ge.s32.totalorder %s34, 1
      %s36 = scalar_select %p35, 0, %s34
      %s37 = sadd.s32 1, %s21
      %s38 = scalar_select %p35, %s37, %s21
      %p39 = scmp.ge.s32.totalorder %s38, 2
      %s40 = scalar_select %p39, 0, %s38
      %s41 = ssub.s32 %s21, %s40
      %s42 = ssub.s32 %s23, %s32
      %s43 = sor.u32 %s41, %s42
      %p44 = scmp.eq.s32.totalorder %s43, 0
      %s46 = sadd.s32 %s45, 1
      %s47 = scalar_select %p44, %s45, %s46
      %p50 = pneg %p44
      %p51 = scmp.eq.s32.totalorder %s14, 1
      %p52 = por %p50, %p51
      %p53 = scmp.ne.s32.totalorder %s45, %s48
      %p54 = scmp.eq.s32.totalorder %s14, 0
      %p55 = por %p53, %p54
      %p56 = scmp.ne.s32.totalorder %s45, %s48
      %p57 = scmp.eq.s32.totalorder %s19, 1
      %p58 = por %p56, %p57
      %p59 = scmp.ne.s32.totalorder %s48, %s49
      %p60 = scmp.eq.s32.totalorder %s19, 0
      %p61 = por %p59, %p60
      %p62 = scmp.ne.s32.totalorder %s48, %s49
      %p63 = scmp.eq.s32.totalorder %s20, 1
      %p64 = por %p62, %p63
      %p66 = scmp.ne.s32.totalorder %s49, %s65
      %p67 = scmp.eq.s32.totalorder %s20, 0
      %p68 = por %p66, %p67
      %s69 = ssub.s32 %s21, %s40
      %p70 = scmp.eq.s32.totalorder %s69, 0
      %s72 = sadd.s32 %s71, 1
      %s73 = scalar_select %p70, %s71, %s72
      %p76 = pneg %p70
      %p77 = scmp.eq.s32.totalorder %s14, 1
      %p78 = por %p76, %p77
      %p79 = scmp.ne.s32.totalorder %s71, %s74
      %p80 = scmp.eq.s32.totalorder %s14, 0
      %p81 = por %p79, %p80
      %p82 = scmp.ne.s32.totalorder %s71, %s74
      %p83 = scmp.eq.s32.totalorder %s19, 1
      %p84 = por %p82, %p83
      %p85 = scmp.ne.s32.totalorder %s74, %s75
      %p86 = scmp.eq.s32.totalorder %s19, 0
      %p87 = por %p85, %p86
      %p88 = scmp.ne.s32.totalorder %s74, %s75
      %p89 = scmp.eq.s32.totalorder %s20, 1
      %p90 = por %p88, %p89
      %p92 = scmp.ne.s32.totalorder %s75, %s91
      %p93 = scmp.eq.s32.totalorder %s20, 0
      %p94 = por %p92, %p93
      %s95 = ssub.s32 %s21, %s40
      %p96 = scmp.eq.s32.totalorder %s95, 0
      %s98 = sadd.s32 %s97, 1
      %s99 = scalar_select %p96, %s97, %s98
      %p102 = pneg %p96
      %p103 = scmp.eq.s32.totalorder %s14, 1
      %p104 = por %p102, %p103
      %p105 = scmp.ne.s32.totalorder %s97, %s100
      %p106 = scmp.eq.s32.totalorder %s14, 0
      %p107 = por %p105, %p106
      %p108 = scmp.ne.s32.totalorder %s97, %s100
      %p109 = scmp.eq.s32.totalorder %s19, 1
      %p110 = por %p108, %p109
      %p111 = scmp.ne.s32.totalorder %s100, %s101
      %p112 = scmp.eq.s32.totalorder %s19, 0
      %p113 = por %p111, %p112
      %p114 = scmp.ne.s32.totalorder %s100, %s101
      %p115 = scmp.eq.s32.totalorder %s20, 1
      %p116 = por %p114, %p115
      %p118 = scmp.ne.s32.totalorder %s101, %s117
      %p119 = scmp.eq.s32.totalorder %s20, 0
      %p120 = por %p118, %p119
      %s121 = ssub.s32 %s22, %s36
      %p122 = scmp.eq.s32.totalorder %s121, 0
      %s124 = sadd.s32 %s123, 1
      %s125 = scalar_select %p122, %s123, %s124
      %p128 = pneg %p122
      %p129 = scmp.eq.s32.totalorder %s14, 1
      %p130 = por %p128, %p129
      %p131 = scmp.ne.s32.totalorder %s123, %s126
      %p132 = scmp.eq.s32.totalorder %s14, 0
      %p133 = por %p131, %p132
      %p134 = scmp.ne.s32.totalorder %s123, %s126
      %p135 = scmp.eq.s32.totalorder %s19, 1
      %p136 = por %p134, %p135
      %p137 = scmp.ne.s32.totalorder %s126, %s127
      %p138 = scmp.eq.s32.totalorder %s19, 0
      %p139 = por %p137, %p138
      %p140 = scmp.ne.s32.totalorder %s126, %s127
      %p141 = scmp.eq.s32.totalorder %s20, 1
      %p142 = por %p140, %p141
      %p144 = scmp.ne.s32.totalorder %s127, %s143
      %p145 = scmp.eq.s32.totalorder %s20, 0
      %p146 = por %p144, %p145
      %s147 = ssub.s32 %s22, %s36
      %p148 = scmp.eq.s32.totalorder %s147, 0
      %s150 = sadd.s32 %s149, 1
      %s151 = scalar_select %p148, %s149, %s150
      %p154 = pneg %p148
      %p155 = scmp.eq.s32.totalorder %s14, 1
      %p156 = por %p154, %p155
      %p157 = scmp.ne.s32.totalorder %s149, %s152
      %p158 = scmp.eq.s32.totalorder %s14, 0
      %p159 = por %p157, %p158
      %p160 = scmp.ne.s32.totalorder %s149, %s152
      %p161 = scmp.eq.s32.totalorder %s19, 1
      %p162 = por %p160, %p161
      %p163 = scmp.ne.s32.totalorder %s152, %s153
      %p164 = scmp.eq.s32.totalorder %s19, 0
      %p165 = por %p163, %p164
      %p166 = scmp.ne.s32.totalorder %s152, %s153
      %p167 = scmp.eq.s32.totalorder %s20, 1
      %p168 = por %p166, %p167
      %p170 = scmp.ne.s32.totalorder %s153, %s169
      %p171 = scmp.eq.s32.totalorder %s20, 0
      %p172 = por %p170, %p171
      %s173 = ssub.s32 %s21, %s40
      %s174 = ssub.s32 %s23, %s32
      %s175 = sor.u32 %s173, %s174
      %s176 = ssub.s32 %s22, %s36
      %s177 = sor.u32 %s175, %s176
      %p178 = scmp.eq.s32.totalorder %s177, 0
      %s180 = sadd.s32 %s179, 1
      %s181 = scalar_select %p178, %s179, %s180
      %p184 = pneg %p178
      %p185 = scmp.eq.s32.totalorder %s14, 1
      %p186 = por %p184, %p185
      %p187 = scmp.ne.s32.totalorder %s179, %s182
      %p188 = scmp.eq.s32.totalorder %s14, 0
      %p189 = por %p187, %p188
      %p190 = scmp.ne.s32.totalorder %s179, %s182
      %p191 = scmp.eq.s32.totalorder %s19, 1
      %p192 = por %p190, %p191
      %p193 = scmp.ne.s32.totalorder %s182, %s183
      %p194 = scmp.eq.s32.totalorder %s19, 0
      %p195 = por %p193, %p194
      %p196 = scmp.ne.s32.totalorder %s182, %s183
      %p197 = scmp.eq.s32.totalorder %s20, 1
      %p198 = por %p196, %p197
      %p200 = scmp.ne.s32.totalorder %s183, %s199
      %p201 = scmp.eq.s32.totalorder %s20, 0
      %p202 = por %p200, %p201
      %p203 = scmp.le.s32.totalorder 1, %s14
      %p204 = scmp.lt.s32.totalorder %s14, 3
      %p205 = pnand %p203, %p204
      %p206 = pneg %p205
      // Predicated region
      $region9: #{tpu_custom_call.1} parent=5 // pred_check
        _
      $region10: #{tpu_custom_call.1} parent=5 // pred_check_branch
        %208 = sbr.rel (%p205) target = $region12
      $region11: #{tpu_custom_call.1} parent=5 // pred_region
        %s209 = ssub.s32 %s14, 1
        // Predicated region
        $region13: #{tpu_custom_call.1} parent=11 // pred_check
          %p210 = pneg %p139
        $region14: #{tpu_custom_call.1} parent=11 // pred_check_branch
          %212 = sbr.rel (%p210) target = $region16
        $region15: #{tpu_custom_call.1} parent=11 // pred_region
          %p213 = scmp.lt.s32.totalorder %s25, 0
          %s214 = scalar_select %p213, %s25, 0
          %s215 = smul.addr %s214, 8
          %s216 = scalar_lea.vmem %s3, %s215
        $region16: #{tpu_custom_call.1} parent=11 // pred_fallthru
          _
        // Predicated region
        $region17: #{tpu_custom_call.1} parent=11 // pred_check
          %p217 = pneg %p165
        $region18: #{tpu_custom_call.1} parent=11 // pred_check_branch
          %219 = sbr.rel (%p217) target = $region20
        $region19: #{tpu_custom_call.1} parent=11 // pred_region
          %p220 = scmp.lt.s32.totalorder %s25, 0
          %s221 = scalar_select %p220, %s25, 0
          %s222 = scalar_lea.vmem %s4, %s221
        $region20: #{tpu_custom_call.1} parent=11 // pred_fallthru
          _
      $region12: #{tpu_custom_call.1} parent=5 // pred_fallthru
        _
      %p223 = scmp.lt.s32.totalorder %s14, 2
      // Predicated region
      $region21: #{tpu_custom_call.1} parent=5 // pred_check
        %p224 = pneg %p223
      $region22: #{tpu_custom_call.1} parent=5 // pred_check_branch
        %226 = sbr.rel (%p224) target = $region24
      $region23: #{tpu_custom_call.1} parent=5 // pred_region
        // Predicated region
        $region25: #{tpu_custom_call.1} parent=23 // pred_check
          %p227 = pneg %p55
        $region26: #{tpu_custom_call.1} parent=23 // pred_check_branch
          %229 = sbr.rel (%p227) target = $region28
        $region27: #{tpu_custom_call.1} parent=23 // pred_region
          %s230 = smul.u32 8, %s23
          %p231 = scmp.lt.s32.totalorder %s21, 1
          %s232 = scalar_select %p231, %s21, 1
          %p233 = scmp.lt.s32.totalorder %s230, 7
          %s234 = scalar_select %p233, %s230, 7
          %s235 = smul.addr %s232, 8
          %s236 = sadd.s32 %s234, %s235
          %s237 = smul.addr %s236, 8
          %s238 = scalar_lea.vmem %s0, %s237
          %s239 = smul.u32 8, %s23
        $region28: #{tpu_custom_call.1} parent=23 // pred_fallthru
          _
        // Predicated region
        $region29: #{tpu_custom_call.1} parent=23 // pred_check
          %p240 = pneg %p81
        $region30: #{tpu_custom_call.1} parent=23 // pred_check_branch
          %242 = sbr.rel (%p240) target = $region32
        $region31: #{tpu_custom_call.1} parent=23 // pred_region
          %p243 = scmp.lt.s32.totalorder %s21, 1
          %s244 = scalar_select %p243, %s21, 1
          %s245 = scalar_lea.vmem %s1, %s244
        $region32: #{tpu_custom_call.1} parent=23 // pred_fallthru
          _
        // Predicated region
        $region33: #{tpu_custom_call.1} parent=23 // pred_check
          %p246 = pneg %p107
        $region34: #{tpu_custom_call.1} parent=23 // pred_check_branch
          %248 = sbr.rel (%p246) target = $region36
        $region35: #{tpu_custom_call.1} parent=23 // pred_region
          %p249 = scmp.lt.s32.totalorder %s21, 1
          %s250 = scalar_select %p249, %s21, 1
          %s251 = scalar_lea.vmem %s2, %s250
        $region36: #{tpu_custom_call.1} parent=23 // pred_fallthru
          _
      $region24: #{tpu_custom_call.1} parent=5 // pred_fallthru
        _
      %p252 = scmp.le.s32.totalorder 1, %s14
      %p253 = scmp.lt.s32.totalorder %s14, 3
      %p254 = pnand %p252, %p253
      %p255 = pneg %p254
      // Predicated region
      $region37: #{tpu_custom_call.1} parent=5 // pred_check
        _
      $region38: #{tpu_custom_call.1} parent=5 // pred_check_branch
        %257 = sbr.rel (%p254) target = $region40
      $region39: #{tpu_custom_call.1} parent=5 // pred_region
        %s258 = ssub.s32 %s14, 1
        %s259 = smul.u32 8, %s26
        %p260 = scmp.lt.s32.totalorder %s24, 1
        %s261 = scalar_select %p260, %s24, 1
        %p262 = scmp.lt.s32.totalorder %s259, 7
        %s263 = scalar_select %p262, %s259, 7
        %s264 = smul.addr %s261, 8
        %s265 = sadd.s32 %s263, %s264
        %s266 = smul.addr %s265, 8
        %s267 = scalar_lea.vmem %s0, %s266
        %p268 = pneg %p61
        %p269 = pneg %p58
        %p270 = scmp.lt.s32.totalorder %s24, 1
        %s271 = scalar_select %p270, %s24, 1
        %s272 = scalar_lea.vmem %s1, %s271
        %p273 = pneg %p87
        %p274 = pneg %p84
        %p275 = scmp.lt.s32.totalorder %s24, 1
        %s276 = scalar_select %p275, %s24, 1
        %s277 = scalar_lea.vmem %s2, %s276
        %p278 = pneg %p113
        %p279 = pneg %p110
        %p280 = scmp.lt.s32.totalorder %s25, 0
        %s281 = scalar_select %p280, %s25, 0
        %s282 = smul.addr %s281, 8
        %s283 = scalar_lea.vmem %s3, %s282
        %p284 = pneg %p139
        %p285 = pneg %p136
        %p286 = scmp.lt.s32.totalorder %s25, 0
        %s287 = scalar_select %p286, %s25, 0
        %s288 = scalar_lea.vmem %s4, %s287
        %p289 = pneg %p165
        %p290 = pneg %p162
        %p291 = pneg %p195
        %p292 = pneg %p192
        %s293 = sand.u32 %s182, 1
        %s294 = scalar_lea.sflag [#allocation3], %s293
        %s295 = sand.u32 %s182, 1
        %s296 = smul.addr %s295, 64
        %s297 = scalar_lea.vmem [#allocation2], %s296
        %s298 = smul.u32 8, %s26
        %p299 = scmp.lt.s32.totalorder %s24, 1
        %s300 = scalar_select %p299, %s24, 1
        %p301 = scmp.lt.s32.totalorder %s298, 7
        %s302 = scalar_select %p301, %s298, 7
        %s303 = smul.addr %s300, 8
        %s304 = sadd.s32 %s302, %s303
        %s305 = smul.addr %s304, 8
        %s306 = scalar_lea.vmem %s0, %s305
        %s307 = smul.u32 8, %s26
        %p308 = scmp.lt.s32.totalorder %s24, 1
        %s309 = scalar_select %p308, %s24, 1
        %s310 = scalar_lea.vmem %s1, %s309
        %p311 = scmp.lt.s32.totalorder %s24, 1
        %s312 = scalar_select %p311, %s24, 1
        %s313 = scalar_lea.vmem %s2, %s312
        %p314 = scmp.lt.s32.totalorder %s25, 0
        %s315 = scalar_select %p314, %s25, 0
        %s316 = smul.addr %s315, 8
        %s317 = scalar_lea.vmem %s3, %s316
        %p318 = scmp.lt.s32.totalorder %s25, 0
        %s319 = scalar_select %p318, %s25, 0
        %s320 = scalar_lea.vmem %s4, %s319
        %s321 = smul.u32 8, %s26
        %v322 = vld [vmem:[%s306] sm:$0xff]
        %v323 = vld [vmem:[%s306 + $0x8] sm:$0xff]
        %v324 = vld [vmem:[%s306 + $0x10] sm:$0xff]
        %v325 = vld [vmem:[%s306 + $0x18] sm:$0xff]
        %v326 = vld [vmem:[%s306 + $0x20] sm:$0xff]
        %v327 = vld [vmem:[%s306 + $0x28] sm:$0xff]
        %v328 = vld [vmem:[%s306 + $0x30] sm:$0xff]
        %v329 = vld [vmem:[%s306 + $0x38] sm:$0xff]
        %vm330 = vcmask 261120
        %v331 = vsel %vm330, %v322, 0.0
        %332 = vadd.xlane.f32.xlu0 %v331
        %v333 = vpop.xlane.xlu0 %332
        %v334 = vsel %vm330, %v323, 0.0
        %335 = vadd.xlane.f32.xlu0 %v334
        %v336 = vpop.xlane.xlu0 %335
        %v337 = vsel %vm330, %v324, 0.0
        %338 = vadd.xlane.f32.xlu0 %v337
        %v339 = vpop.xlane.xlu0 %338
        %v340 = vsel %vm330, %v325, 0.0
        %341 = vadd.xlane.f32.xlu0 %v340
        %v342 = vpop.xlane.xlu0 %341
        %v343 = vsel %vm330, %v326, 0.0
        %344 = vadd.xlane.f32.xlu0 %v343
        %v345 = vpop.xlane.xlu0 %344
        %v346 = vsel %vm330, %v327, 0.0
        %347 = vadd.xlane.f32.xlu0 %v346
        %v348 = vpop.xlane.xlu0 %347
        %v349 = vsel %vm330, %v328, 0.0
        %350 = vadd.xlane.f32.xlu0 %v349
        %v351 = vpop.xlane.xlu0 %350
        %v352 = vsel %vm330, %v329, 0.0
        %353 = vadd.xlane.f32.xlu0 %v352
        %v354 = vpop.xlane.xlu0 %353
        %v355 = vrcp.pop 32.0
        %v356 = vmul.f32 %v333, %v355
        %v357 = vmul.f32 %v336, %v355
        %v358 = vmul.f32 %v339, %v355
        %v359 = vmul.f32 %v342, %v355
        %v360 = vmul.f32 %v345, %v355
        %v361 = vmul.f32 %v348, %v355
        %v362 = vmul.f32 %v351, %v355
        %v363 = vmul.f32 %v354, %v355
        %v364 = vmul.f32 %v322, %v322
        %v365 = vmul.f32 %v323, %v323
        %v366 = vmul.f32 %v324, %v324
        %v367 = vmul.f32 %v325, %v325
        %v368 = vmul.f32 %v326, %v326
        %v369 = vmul.f32 %v327, %v327
        %v370 = vmul.f32 %v328, %v328
        %v371 = vmul.f32 %v329, %v329
        %v372 = vsel %vm330, %v364, 0.0
        %373 = vadd.xlane.f32.xlu0 %v372
        %v374 = vpop.xlane.xlu0 %373
        %v375 = vsel %vm330, %v365, 0.0
        %376 = vadd.xlane.f32.xlu0 %v375
        %v377 = vpop.xlane.xlu0 %376
        %v378 = vsel %vm330, %v366, 0.0
        %379 = vadd.xlane.f32.xlu0 %v378
        %v380 = vpop.xlane.xlu0 %379
        %v381 = vsel %vm330, %v367, 0.0
        %382 = vadd.xlane.f32.xlu0 %v381
        %v383 = vpop.xlane.xlu0 %382
        %v384 = vsel %vm330, %v368, 0.0
        %385 = vadd.xlane.f32.xlu0 %v384
        %v386 = vpop.xlane.xlu0 %385
        %v387 = vsel %vm330, %v369, 0.0
        %388 = vadd.xlane.f32.xlu0 %v387
        %v389 = vpop.xlane.xlu0 %388
        %v390 = vsel %vm330, %v370, 0.0
        %391 = vadd.xlane.f32.xlu0 %v390
        %v392 = vpop.xlane.xlu0 %391
        %v393 = vsel %vm330, %v371, 0.0
        %394 = vadd.xlane.f32.xlu0 %v393
        %v395 = vpop.xlane.xlu0 %394
        %v396 = vmul.f32 %v374, %v355
        %v397 = vmul.f32 %v377, %v355
        %v398 = vmul.f32 %v380, %v355
        %v399 = vmul.f32 %v383, %v355
        %v400 = vmul.f32 %v386, %v355
        %v401 = vmul.f32 %v389, %v355
        %v402 = vmul.f32 %v392, %v355
        %v403 = vmul.f32 %v395, %v355
        %v404 = vmul.f32 %v356, %v356
        %v405 = vmul.f32 %v357, %v357
        %v406 = vmul.f32 %v358, %v358
        %v407 = vmul.f32 %v359, %v359
        %v408 = vmul.f32 %v360, %v360
        %v409 = vmul.f32 %v361, %v361
        %v410 = vmul.f32 %v362, %v362
        %v411 = vmul.f32 %v363, %v363
        %v412 = vsub.f32 %v396, %v404
        %v413 = vsub.f32 %v397, %v405
        %v414 = vsub.f32 %v398, %v406
        %v415 = vsub.f32 %v399, %v407
        %v416 = vsub.f32 %v400, %v408
        %v417 = vsub.f32 %v401, %v409
        %v418 = vsub.f32 %v402, %v410
        %v419 = vsub.f32 %v403, %v411
        %v420 = vmax.f32 %v412, 0.0
        %v421 = vmax.f32 %v413, 0.0
        %v422 = vmax.f32 %v414, 0.0
        %v423 = vmax.f32 %v415, 0.0
        %v424 = vmax.f32 %v416, 0.0
        %v425 = vmax.f32 %v417, 0.0
        %v426 = vmax.f32 %v418, 0.0
        %v427 = vmax.f32 %v419, 0.0
        %v428 = vsub.f32 %v322, %v356
        %v429 = vsub.f32 %v323, %v357
        %v430 = vsub.f32 %v324, %v358
        %v431 = vsub.f32 %v325, %v359
        %v432 = vsub.f32 %v326, %v360
        %v433 = vsub.f32 %v327, %v361
        %v434 = vsub.f32 %v328, %v362
        %v435 = vsub.f32 %v329, %v363
        %v436 = vadd.f32 %v420, 1e-06
        %v437 = vadd.f32 %v421, 1e-06
        %v438 = vadd.f32 %v422, 1e-06
        %v439 = vadd.f32 %v423, 1e-06
        %v440 = vadd.f32 %v424, 1e-06
        %v441 = vadd.f32 %v425, 1e-06
        %v442 = vadd.f32 %v426, 1e-06
        %v443 = vadd.f32 %v427, 1e-06
        %v444 = vrsqrt.pop %v436
        %v445 = vrsqrt.pop %v437
        %v446 = vrsqrt.pop %v438
        %v447 = vrsqrt.pop %v439
        %v448 = vrsqrt.pop %v440
        %v449 = vrsqrt.pop %v441
        %v450 = vrsqrt.pop %v442
        %v451 = vrsqrt.pop %v443
        %v452 = vmul.f32 %v428, %v444
        %v453 = vmul.f32 %v429, %v445
        %v454 = vmul.f32 %v430, %v446
        %v455 = vmul.f32 %v431, %v447
        %v456 = vmul.f32 %v432, %v448
        %v457 = vmul.f32 %v433, %v449
        %v458 = vmul.f32 %v434, %v450
        %v459 = vmul.f32 %v435, %v451
        %v460 = vld [vmem:[%s310] sm:$0x1]
        %v461 = vadd.f32 %v460, 1.0
        %v463 = vlaneseq
        %v464 = vshrl.u32 %v463, 7
        %v465 = vsub.s32 0, %v464
        %v466 = vrot.slane %v461, %v465
        %v468 = vmul.f32 %v466, %v452
        %v469 = vmul.f32 %v466, %v453
        %v470 = vmul.f32 %v466, %v454
        %v471 = vmul.f32 %v466, %v455
        %v472 = vmul.f32 %v466, %v456
        %v473 = vmul.f32 %v466, %v457
        %v474 = vmul.f32 %v466, %v458
        %v475 = vmul.f32 %v466, %v459
        %v476 = vld [vmem:[%s313] sm:$0x1]
        %v478 = vlaneseq
        %v479 = vshrl.u32 %v478, 7
        %v480 = vsub.s32 0, %v479
        %v481 = vrot.slane %v476, %v480
        %v483 = vadd.f32 %v468, %v481
        %v484 = vadd.f32 %v469, %v481
        %v485 = vadd.f32 %v470, %v481
        %v486 = vadd.f32 %v471, %v481
        %v487 = vadd.f32 %v472, %v481
        %v488 = vadd.f32 %v473, %v481
        %v489 = vadd.f32 %v474, %v481
        %v490 = vadd.f32 %v475, %v481
        %v491 = vld [vmem:[%s317] sm:$0xff]
        %v492 = vld [vmem:[%s317 + $0x8] sm:$0xff]
        %v493 = vld [vmem:[%s317 + $0x10] sm:$0xff]
        %v494 = vld [vmem:[%s317 + $0x18] sm:$0xff]
        %v495 = vld [vmem:[%s320] sm:$0x1]
        %v497 = vlaneseq
        %v498 = vshrl.u32 %v497, 7
        %v499 = vsub.s32 0, %v498
        %v500 = vrot.slane %v495, %v499
        %v503 = vsel %vm330, %v483, 0
        %v506 = vsel %vm330, %v484, 0
        %v509 = vsel %vm330, %v485, 0
        %v512 = vsel %vm330, %v486, 0
        %v515 = vsel %vm330, %v487, 0
        %v518 = vsel %vm330, %v488, 0
        %v521 = vsel %vm330, %v489, 0
        %v524 = vsel %vm330, %v490, 0
        %526 = vmatprep.subr.mxu0 0.0
        %527 = vmatpush1.msra.mxu0 %v491
        %528 = vmatprep.subr.mxu0 0.0
        %529 = vmatpush1.msra.mxu0 %v492
        %530 = vmatprep.subr.mxu0 0.0
        %531 = vmatpush1.msra.mxu0 %v493
        %532 = vmatprep.subr.mxu0 0.0
        %533 = vmatpush1.msra.mxu0 %v494
        %534 = vmatprep.subr.mxu0 0.0
        %535 = vmatpush1.msra.mxu0 0.0
        %536 = vmatprep.subr.mxu0 0.0
        %537 = vmatpush1.msra.mxu0 0.0
        %538 = vmatprep.subr.mxu0 0.0
        %539 = vmatpush1.msra.mxu0 0.0
        %540 = vmatprep.subr.mxu0 0.0
        %541 = vmatpush1.msra.mxu0 0.0
        %542 = vmatprep.subr.mxu0 0.0
        %543 = vmatpush1.msra.mxu0 0.0
        %544 = vmatprep.subr.mxu0 0.0
        %545 = vmatpush1.msra.mxu0 0.0
        %546 = vmatprep.subr.mxu0 0.0
        %547 = vmatpush1.msra.mxu0 0.0
        %548 = vmatprep.subr.mxu0 0.0
        %549 = vmatpush1.msra.mxu0 0.0
        %550 = vmatprep.subr.mxu0 0.0
        %551 = vmatpush1.msra.mxu0 0.0
        %552 = vmatprep.subr.mxu0 0.0
        %553 = vmatpush1.msra.mxu0 0.0
        %554 = vmatprep.subr.mxu0 0.0
        %555 = vmatpush1.msra.mxu0 0.0
        %556 = vmatprep.subr.mxu0 0.0
        %557 = vmatpush1.msra.mxu0 0.0
        %558 = vmatprep.subr.mxu0 0.0
        %559 = vmatpush1.msra.mxu0 0.0
        %560 = vmatprep.subr.mxu0 0.0
        %561 = vmatpush1.msra.mxu0 0.0
        %562 = vmatprep.subr.mxu0 0.0
        %563 = vmatpush1.msra.mxu0 0.0
        %564 = vmatprep.subr.mxu0 0.0
        %565 = vmatpush1.msra.mxu0 0.0
        %566 = vmatprep.subr.mxu0 0.0
        %567 = vmatpush1.msra.mxu0 0.0
        %568 = vmatprep.subr.mxu0 0.0
        %569 = vmatpush1.msra.mxu0 0.0
        %570 = vmatprep.subr.mxu0 0.0
        %571 = vmatpush1.msra.mxu0 0.0
        %572 = vmatprep.subr.mxu0 0.0
        %573 = vmatpush1.msra.mxu0 0.0
        %574 = vmatprep.subr.mxu0 0.0
        %575 = vmatpush1.msra.mxu0 0.0
        %576 = vmatprep.subr.mxu0 0.0
        %577 = vmatpush1.msra.mxu0 0.0
        %578 = vmatprep.subr.mxu0 0.0
        %579 = vmatpush1.msra.mxu0 0.0
        %580 = vmatprep.subr.mxu0 0.0
        %581 = vmatpush1.msra.mxu0 0.0
        %582 = vmatprep.subr.mxu0 0.0
        %583 = vmatpush1.msra.mxu0 0.0
        %584 = vmatprep.subr.mxu0 0.0
        %585 = vmatpush1.msra.mxu0 0.0
        %586 = vmatprep.subr.mxu0 0.0
        %587 = vmatpush1.msra.mxu0 0.0
        %588 = vmatprep.subr.mxu0 0.0
        %589 = vmatpush1.msra.mxu0 0.0
        %590 = vmatprep.mubr.f32.mxu0 0.0
        %591 = vmatmul.mubr.f32.gmra.mrb[0].mxu0 %v503
        %v592 = vpop.f32.mrb[0].mxu0
        %v593 = vadd.f32 %v500, %v592
        %v594 = vpop.f32.mrb[0].mxu0
        %595 = vmatprep.mubr.f32.mxu0 0.0
        %596 = vmatmul.mubr.f32.gmra.mrb[0].mxu0 %v506
        %v597 = vpop.f32.mrb[0].mxu0
        %v598 = vadd.f32 %v500, %v597
        %v599 = vpop.f32.mrb[0].mxu0
        %600 = vmatprep.mubr.f32.mxu0 0.0
        %601 = vmatmul.mubr.f32.gmra.mrb[0].mxu0 %v509
        %v602 = vpop.f32.mrb[0].mxu0
        %v603 = vadd.f32 %v500, %v602
        %v604 = vpop.f32.mrb[0].mxu0
        %605 = vmatprep.mubr.f32.mxu0 0.0
        %606 = vmatmul.mubr.f32.gmra.mrb[0].mxu0 %v512
        %v607 = vpop.f32.mrb[0].mxu0
        %v608 = vadd.f32 %v500, %v607
        %v609 = vpop.f32.mrb[0].mxu0
        %610 = vmatprep.mubr.f32.mxu0 0.0
        %611 = vmatmul.mubr.f32.gmra.mrb[0].mxu0 %v515
        %v612 = vpop.f32.mrb[0].mxu0
        %v613 = vadd.f32 %v500, %v612
        %v614 = vpop.f32.mrb[0].mxu0
        %615 = vmatprep.mubr.f32.mxu0 0.0
        %616 = vmatmul.mubr.f32.gmra.mrb[0].mxu0 %v518
        %v617 = vpop.f32.mrb[0].mxu0
        %v618 = vadd.f32 %v500, %v617
        %v619 = vpop.f32.mrb[0].mxu0
        %620 = vmatprep.mubr.f32.mxu0 0.0
        %621 = vmatmul.mubr.f32.gmra.mrb[0].mxu0 %v521
        %v622 = vpop.f32.mrb[0].mxu0
        %v623 = vadd.f32 %v500, %v622
        %v624 = vpop.f32.mrb[0].mxu0
        %625 = vmatprep.mubr.f32.mxu0 0.0
        %626 = vmatmul.mubr.f32.gmra.mrb[0].mxu0 %v524
        %v627 = vpop.f32.mrb[0].mxu0
        %v628 = vadd.f32 %v500, %v627
        %v629 = vpop.f32.mrb[0].mxu0
        %630 = vdwg.mxu0
        %631 = vst [vmem:[%s297] sm:$0xff] %v593
        %632 = vst [vmem:[%s297 + $0x8] sm:$0xff] %v598
        %633 = vst [vmem:[%s297 + $0x10] sm:$0xff] %v603
        %634 = vst [vmem:[%s297 + $0x18] sm:$0xff] %v608
        %635 = vst [vmem:[%s297 + $0x20] sm:$0xff] %v613
        %636 = vst [vmem:[%s297 + $0x28] sm:$0xff] %v618
        %637 = vst [vmem:[%s297 + $0x30] sm:$0xff] %v623
        %638 = vst [vmem:[%s297 + $0x38] sm:$0xff] %v628
        %s639 = sand.u32 %s182, 1
        %s640 = scalar_lea.sflag [#allocation3], %s639
        %s641 = sand.u32 %s182, 1
        %s642 = smul.addr %s641, 64
        %s643 = scalar_lea.vmem [#allocation2], %s642
        // Predicated region
        $region41: #{tpu_custom_call.1} parent=39 // pred_check
          %p644 = pneg %p192
        $region42: #{tpu_custom_call.1} parent=39 // pred_check_branch
          %646 = sbr.rel (%p644) target = $region44
        $region43: #{tpu_custom_call.1} parent=39 // pred_region
          %s647 = smul.u32 8, %s26
          %s649 = ssub.s32 1024, 1024
          %650 = vsyncadd %s640, %s649
          %s651 = sadd.s32 %s25, %s647
          %s652 = smul.addr %s24, 8
          %s653 = sadd.s32 %s651, %s652
          %s654 = smul.addr %s653, 128
          %s655 = scalar_lea.hbm %s5, %s654
          %s656 = sshll.u32 %s643, 4
          %s657 = int_to_ptr.vmem [resolvable:$true] %s656
          %662 = dma.vmem_to_hbm [thread:$0]  %s657, 1024, %s655, %s640, 128, 128, 8
        $region44: #{tpu_custom_call.1} parent=39 // pred_fallthru
          _
      $region40: #{tpu_custom_call.1} parent=5 // pred_fallthru
        _
      %p663 = scmp.le.s32.totalorder 2, %s14
      // Predicated region
      $region45: #{tpu_custom_call.1} parent=5 // pred_check
        %p664 = pneg %p663
      $region46: #{tpu_custom_call.1} parent=5 // pred_check_branch
        %666 = sbr.rel (%p664) target = $region48
      $region47: #{tpu_custom_call.1} parent=5 // pred_region
        %s667 = ssub.s32 %s14, 2
        // Predicated region
        $region49: #{tpu_custom_call.1} parent=47 // pred_check
          %p668 = pneg %p198
        $region50: #{tpu_custom_call.1} parent=47 // pred_check_branch
          %670 = sbr.rel (%p668) target = $region52
        $region51: #{tpu_custom_call.1} parent=47 // pred_region
          %s671 = sand.u32 %s183, 1
          %s672 = scalar_lea.sflag [#allocation3], %s671
          %s673 = sand.u32 %s183, 1
          %s674 = smul.addr %s673, 64
          %s675 = scalar_lea.vmem [#allocation2], %s674
          %676 = dma.done %s672, 1024
        $region52: #{tpu_custom_call.1} parent=47 // pred_fallthru
          _
      $region48: #{tpu_custom_call.1} parent=5 // pred_fallthru
        _
    $region6: #{tpu_custom_call.1} parent=1 // loop_footer
      %s18 = sadd.s32 1, %s14
    $region7: #{tpu_custom_call.1} parent=1 // loop_footer_branch
      %13 = sbr.rel target = $region3
    $region8: #{tpu_custom_call.1} parent=1 // loop_exit
      _
    %677 = vsyncpa [#allocation3], 1
    %s678 = scalar_lea.sflag [#allocation3], 1
    %679 = vsyncpa %s678, 1

</llo_original>
